<compile_context>
chip_gen: v6e
topology: v6e:2x2x1
jax: 0.10.0
libtpu: 0.0.40
codegen_flags: <defaults>
</compile_context>

<pallas_src>
import functools

import jax
import jax.numpy as jnp
from jax.experimental import pallas as pl
from jax.experimental.pallas import tpu as pltpu

_LANE = 128      # lane width (last dim)
_SUBLANE = 8     # f32 sublane packing (second-to-last dim)


def _round_up(x, m):
    return ((x + m - 1) // m) * m


def _fused_mlp_kernel(*refs, num_layers, use_sigmoid):
    """refs = (x_ref, w0, b0, w1, b1, ..., w{L-1}, b{L-1}, o_ref).

    Computes o = [sigmoid](Linear_{L-1}(relu(...relu(Linear_0(x))...))) for one
    batch tile. All layer weights are VMEM-resident. Matmuls run in the weight
    dtype (bf16 by default) with f32 accumulation; all elementwise math is f32.
    """
    x_ref = refs[0]
    o_ref = refs[-1]

    h = x_ref[...].astype(jnp.float32)              # (block_m, K0_pad)
    for i in range(num_layers):
        w_ref = refs[1 + 2 * i]                     # (K_pad, N_pad), compute dtype
        b_ref = refs[2 + 2 * i]                     # (1, N_pad), f32
        # MXU matmul: operands in the (possibly bf16) weight dtype, f32 accum.
        h = jnp.dot(h.astype(w_ref.dtype), w_ref[...],
                    preferred_element_type=jnp.float32)
        h = h + b_ref[...].astype(jnp.float32)      # broadcast over batch rows
        if i < num_layers - 1:
            h = jnp.maximum(h, 0.0)                 # ReLU on hidden layers only
    if use_sigmoid:
        # sigmoid(x) == 0.5*(tanh(0.5*x)+1): single EUP tanh + cheap VPU ops,
        # no exact divide in the (matmul-free) tail.
        h = 0.5 * (jnp.tanh(0.5 * h) + 1.0)
    o_ref[...] = h.astype(o_ref.dtype)


def prepare_params(params, compute_dtype=jnp.bfloat16):
    """Pad params to (8,128)-aligned, lane-dense shapes. Call ONCE at init.

    params: list of (w:(in,out), b:(out,)).
    Returns (layers, out_dim): layers = [(w_pad, b_pad), ...] with w_pad cast to
    `compute_dtype` (MXU operand dtype) and b_pad kept in f32 (VPU math).
    Zero padding is mathematically inert.
    """
    assert len(params) >= 1
    in_dim = params[0][0].shape[0]
    out_dim = params[-1][0].shape[1]
    cur_in_pad = _round_up(in_dim, _LANE)
    layers = []
    for (w, b) in params:
        k, n = w.shape
        assert b.shape == (n,)
        n_pad = _round_up(n, _LANE)
        w_p = jnp.pad(w.astype(compute_dtype),
                      ((0, cur_in_pad - k), (0, n_pad - n)))
        b_p = jnp.pad(b.astype(jnp.float32).reshape(1, n),
                      ((0, 0), (0, n_pad - n)))
        layers.append((w_p, b_p))
        cur_in_pad = n_pad
    return layers, out_dim


def mlp_forward_padded(layers, x, *, out_dim, use_sigmoid=True,
                       max_block_m=512, single_buffer_weights=None):
    """Fused MLP forward on pre-padded params (see prepare_params).

    layers: [(w_pad:(Kp,Np) compute dtype, b_pad:(1,Np) f32), ...]
    x: (B, in_dim). Returns (B, out_dim) in x.dtype.
    Keyword args are Python-static (close over them / use functools.partial
    before jit).
    """
    B, in_dim = x.shape
    num_layers = len(layers)
    k0_pad = layers[0][0].shape[0]
    n_out_pad = layers[-1][0].shape[1]
    assert in_dim <= k0_pad and out_dim <= n_out_pad

    # Batch tiling: single grid step for small B; 512-row tiles otherwise.
    # B is only padded up to the sublane multiple; a partial last tile is
    # handled by Pallas (edge stores are masked, garbage edge rows never land).
    if B <= max_block_m:
        block_m = _round_up(B, _SUBLANE)
    else:
        block_m = max_block_m
    B_pad = _round_up(B, _SUBLANE)
    grid_m = pl.cdiv(B_pad, block_m)

    # One pad op for the input slab (lane-dense K, sublane-aligned B).
    x_pad = jnp.pad(x, ((0, B_pad - B), (0, k0_pad - in_dim)))

    # Weight residency / buffering. The weight BlockSpecs have a constant block
    # index, so with big weights double-buffering them is pure VMEM waste
    # (matters most on v7x's 64 MiB VMEM) -> switch to a single buffer.
    w_bytes = sum(w.size * w.dtype.itemsize + b.size * b.dtype.itemsize
                  for (w, b) in layers)
    if single_buffer_weights is None:
        single_buffer_weights = w_bytes > (8 << 20)
    w_spec_kwargs = (
        dict(pipeline_mode=pl.Buffered(1)) if single_buffer_weights else {})

    in_specs = [pl.BlockSpec((block_m, k0_pad), lambda i: (i, 0))]
    flat_inputs = [x_pad]
    for (w_p, b_p) in layers:
        in_specs.append(pl.BlockSpec(w_p.shape, lambda i: (0, 0), **w_spec_kwargs))
        in_specs.append(pl.BlockSpec(b_p.shape, lambda i: (0, 0), **w_spec_kwargs))
        flat_inputs.append(w_p)
        flat_inputs.append(b_p)
    out_spec = pl.BlockSpec((block_m, n_out_pad), lambda i: (i, 0))

    # VMEM footprint estimate: io tiles double-buffered, weights x1 or x2,
    # plus roughly one activation-sized f32 scratch for `h`.
    max_n_pad = max(w.shape[1] for (w, _) in layers)
    itemsize = jnp.dtype(x.dtype).itemsize
    est_vmem = (2 * block_m * (k0_pad + n_out_pad) * itemsize
                + (1 if single_buffer_weights else 2) * w_bytes
                + 2 * block_m * max_n_pad * 4)
    compiler_kwargs = dict(
        # Megacore/TC sharding of the batch axis only pays off with >1 tile.
        dimension_semantics=("parallel",) if grid_m > 1 else ("arbitrary",))
    if est_vmem > (12 << 20):
        # Raise the scoped VMEM limit (defaults: ~16 MiB v5e, ~32 MiB v6e/v7x).
        compiler_kwargs["vmem_limit_bytes"] = min(
            int(est_vmem * 3 // 2) + (2 << 20), 96 << 20)

    kernel = functools.partial(
        _fused_mlp_kernel, num_layers=num_layers, use_sigmoid=use_sigmoid)

    out_pad = pl.pallas_call(
        kernel,
        out_shape=jax.ShapeDtypeStruct((B_pad, n_out_pad), x.dtype),
        grid_spec=pltpu.PrefetchScalarGridSpec(
            num_scalar_prefetch=0,
            grid=(grid_m,),
            in_specs=in_specs,
            out_specs=out_spec,
        ),
        compiler_params=pltpu.CompilerParams(**compiler_kwargs),
    )(*flat_inputs)

    # Consumers that can take the lane-dense padded slab should skip this slice.
    return out_pad[:B, :out_dim]


def mlp_forward(params, x, use_sigmoid=True, *,
                compute_dtype=jnp.bfloat16, **kwargs):
    """Convenience wrapper: pads params then runs the fused kernel.

    For repeated calls (inference loops), call prepare_params() once and jit
    mlp_forward_padded instead -- the padding is real per-call XLA work.
    """
    layers, out_dim = prepare_params(params, compute_dtype=compute_dtype)
    return mlp_forward_padded(layers, x, out_dim=out_dim,
                              use_sigmoid=use_sigmoid, **kwargs)


def init_mlp_params(key, input_dim, output_dim, depth, width, bias=True):
    """Deterministic init mirroring nn.Linear's U(-1/sqrt(fan_in), 1/sqrt(fan_in))."""
    if depth == 0:
        dims = [(input_dim, output_dim)]
    else:
        dims = [(input_dim, width)]
        dims += [(width, width)] * (depth - 1)
        dims += [(width, output_dim)]
    params = []
    for (fan_in, fan_out) in dims:
        key, kw, kb = jax.random.split(key, 3)
        bound = 1.0 / (fan_in ** 0.5)
        w = jax.random.uniform(kw, (fan_in, fan_out), jnp.float32, -bound, bound)
        if bias:
            b_ = jax.random.uniform(kb, (fan_out,), jnp.float32, -bound, bound)
        else:
            b_ = jnp.zeros((fan_out,), jnp.float32)
        params.append((w, b_))
    return params


def _reference_forward(params, x, use_sigmoid):
    ref = x
    for i, (w, b) in enumerate(params):
        ref = ref @ w + b
        if i < len(params) - 1:
            ref = jnp.maximum(ref, 0.0)
    if use_sigmoid:
        ref = jax.nn.sigmoid(ref)
    return ref


if __name__ == "__main__":
    key = jax.random.PRNGKey(0)

    # Config: MLP(input_dim=2, output_dim=3, depth=2, width=256,
    #             bias=True, use_sigmoid=True)
    input_dim, output_dim, depth, width = 2, 3, 2, 256
    batch = 16

    kx, kp = jax.random.split(key)
    x = jax.random.normal(kx, (batch, input_dim), jnp.float32)
    params = init_mlp_params(kp, input_dim, output_dim, depth, width, bias=True)

    # 1) bf16-operand path: pad/cast params ONCE (hoisted out of the forward),
    #    then jit the forward over the cached padded params.
    layers, out_dim = prepare_params(params, compute_dtype=jnp.bfloat16)
    fwd = jax.jit(functools.partial(
        mlp_forward_padded, out_dim=out_dim, use_sigmoid=True))
    out = jax.block_until_ready(fwd(layers, x))
    ref = _reference_forward(params, x, True)
    assert out.shape == (batch, output_dim)
    assert jnp.allclose(out, ref, atol=1e-2, rtol=1e-2), \
        float(jnp.max(jnp.abs(out - ref)))

    # 2) depth=0 path (single Linear + Sigmoid), f32 compute for tight tolerance.
    params0 = init_mlp_params(kp, input_dim, output_dim, 0, width, bias=True)
    out0 = jax.block_until_ready(
        mlp_forward(params0, x, use_sigmoid=True, compute_dtype=jnp.float32))
    ref0 = _reference_forward(params0, x, True)
    assert out0.shape == (batch, output_dim)
    assert jnp.allclose(out0, ref0, atol=1e-5, rtol=1e-5)

    # 3) multi-tile batch path ("parallel" grid, uneven last block), f32 compute.
    xb = jax.random.normal(kx, (600, input_dim), jnp.float32)
    outb = jax.block_until_ready(
        mlp_forward(params, xb, use_sigmoid=True,
                    compute_dtype=jnp.float32, max_block_m=256))
    refb = _reference_forward(params, xb, True)
    assert outb.shape == (600, output_dim)
    assert jnp.allclose(outb, refb, atol=1e-5, rtol=1e-5)

    print("KERNEL_OK")
</pallas_src>

<mosaic_0001>
module attributes {stable_mosaic.version = 11 : i64} {
  func.func @_fused_mlp_kernel(%arg0: i32, %arg1: memref<16x128xf32, #tpu.memory_space<vmem>>, %arg2: memref<128x256xbf16, #tpu.memory_space<vmem>>, %arg3: memref<1x256xf32, #tpu.memory_space<vmem>>, %arg4: memref<256x256xbf16, #tpu.memory_space<vmem>>, %arg5: memref<1x256xf32, #tpu.memory_space<vmem>>, %arg6: memref<256x128xbf16, #tpu.memory_space<vmem>>, %arg7: memref<1x128xf32, #tpu.memory_space<vmem>>, %arg8: memref<16x128xf32, #tpu.memory_space<vmem>>) attributes {dimension_semantics = [#tpu.dimension_semantics<arbitrary>], iteration_bounds = array<i64: 1>, scalar_prefetch = 0 : i64, scratch_operands = 0 : i64, tpu.core_type = #tpu.core_type<tc>, window_params = [{transform_indices = @transform_0, window_bounds = array<i64: 16, 128>}, {pipeline_mode = #tpu.pipeline_mode<synchronous>, transform_indices = @transform_1, window_bounds = array<i64: 128, 256>}, {pipeline_mode = #tpu.pipeline_mode<synchronous>, transform_indices = @transform_2, window_bounds = array<i64: 1, 256>}, {pipeline_mode = #tpu.pipeline_mode<synchronous>, transform_indices = @transform_3, window_bounds = array<i64: 256, 256>}, {pipeline_mode = #tpu.pipeline_mode<synchronous>, transform_indices = @transform_4, window_bounds = array<i64: 1, 256>}, {pipeline_mode = #tpu.pipeline_mode<synchronous>, transform_indices = @transform_5, window_bounds = array<i64: 256, 128>}, {pipeline_mode = #tpu.pipeline_mode<synchronous>, transform_indices = @transform_6, window_bounds = array<i64: 1, 128>}, {transform_indices = @transform_7, window_bounds = array<i64: 16, 128>}]} {
    %c0 = arith.constant 0 : index
    %c0_0 = arith.constant 0 : index
    %0 = vector.load %arg1[%c0, %c0_0] : memref<16x128xf32, #tpu.memory_space<vmem>>, vector<16x128xf32>
    %1 = arith.truncf %0 : vector<16x128xf32> to vector<16x128xbf16>
    %c0_1 = arith.constant 0 : index
    %c0_2 = arith.constant 0 : index
    %2 = vector.load %arg2[%c0_1, %c0_2] : memref<128x256xbf16, #tpu.memory_space<vmem>>, vector<128x256xbf16>
    %cst = arith.constant dense<0.000000e+00> : vector<16x256xf32>
    %3 = tpu.matmul %1, %2, %cst {dimension_numbers = #tpu.dot_dimension_numbers<[1], [0], [0], [1], [0, 0, 1, 1], [], []>} : vector<16x128xbf16>, vector<128x256xbf16>, vector<16x256xf32> -> vector<16x256xf32>
    %c0_3 = arith.constant 0 : index
    %c0_4 = arith.constant 0 : index
    %4 = vector.load %arg3[%c0_3, %c0_4] : memref<1x256xf32, #tpu.memory_space<vmem>>, vector<1x256xf32>
    %5 = vector.broadcast %4 : vector<1x256xf32> to vector<16x256xf32>
    %6 = arith.addf %3, %5 : vector<16x256xf32>
    %cst_5 = arith.constant 0.000000e+00 : f32
    %7 = vector.broadcast %cst_5 : f32 to vector<16x256xf32>
    %8 = arith.maximumf %6, %7 : vector<16x256xf32>
    %9 = arith.truncf %8 : vector<16x256xf32> to vector<16x256xbf16>
    %c0_6 = arith.constant 0 : index
    %c0_7 = arith.constant 0 : index
    %10 = vector.load %arg4[%c0_6, %c0_7] : memref<256x256xbf16, #tpu.memory_space<vmem>>, vector<256x256xbf16>
    %cst_8 = arith.constant dense<0.000000e+00> : vector<16x256xf32>
    %11 = tpu.matmul %9, %10, %cst_8 {dimension_numbers = #tpu.dot_dimension_numbers<[1], [0], [0], [1], [0, 0, 1, 1], [], []>} : vector<16x256xbf16>, vector<256x256xbf16>, vector<16x256xf32> -> vector<16x256xf32>
    %c0_9 = arith.constant 0 : index
    %c0_10 = arith.constant 0 : index
    %12 = vector.load %arg5[%c0_9, %c0_10] : memref<1x256xf32, #tpu.memory_space<vmem>>, vector<1x256xf32>
    %13 = vector.broadcast %12 : vector<1x256xf32> to vector<16x256xf32>
    %14 = arith.addf %11, %13 : vector<16x256xf32>
    %cst_11 = arith.constant 0.000000e+00 : f32
    %15 = vector.broadcast %cst_11 : f32 to vector<16x256xf32>
    %16 = arith.maximumf %14, %15 : vector<16x256xf32>
    %17 = arith.truncf %16 : vector<16x256xf32> to vector<16x256xbf16>
    %c0_12 = arith.constant 0 : index
    %c0_13 = arith.constant 0 : index
    %18 = vector.load %arg6[%c0_12, %c0_13] : memref<256x128xbf16, #tpu.memory_space<vmem>>, vector<256x128xbf16>
    %cst_14 = arith.constant dense<0.000000e+00> : vector<16x128xf32>
    %19 = tpu.matmul %17, %18, %cst_14 {dimension_numbers = #tpu.dot_dimension_numbers<[1], [0], [0], [1], [0, 0, 1, 1], [], []>} : vector<16x256xbf16>, vector<256x128xbf16>, vector<16x128xf32> -> vector<16x128xf32>
    %c0_15 = arith.constant 0 : index
    %c0_16 = arith.constant 0 : index
    %20 = vector.load %arg7[%c0_15, %c0_16] : memref<1x128xf32, #tpu.memory_space<vmem>>, vector<1x128xf32>
    %21 = vector.broadcast %20 : vector<1x128xf32> to vector<16x128xf32>
    %22 = arith.addf %19, %21 : vector<16x128xf32>
    %cst_17 = arith.constant 5.000000e-01 : f32
    %23 = vector.broadcast %cst_17 : f32 to vector<16x128xf32>
    %24 = arith.mulf %23, %22 : vector<16x128xf32>
    %25 = math.tanh %24 : vector<16x128xf32>
    %cst_18 = arith.constant 1.000000e+00 : f32
    %26 = vector.broadcast %cst_18 : f32 to vector<16x128xf32>
    %27 = arith.addf %25, %26 : vector<16x128xf32>
    %cst_19 = arith.constant 5.000000e-01 : f32
    %28 = vector.broadcast %cst_19 : f32 to vector<16x128xf32>
    %29 = arith.mulf %28, %27 : vector<16x128xf32>
    %c0_20 = arith.constant 0 : index
    %c0_21 = arith.constant 0 : index
    %30 = vector.load %arg8[%c0_20, %c0_21] : memref<16x128xf32, #tpu.memory_space<vmem>>, vector<16x128xf32>
    tpu.vector_store %arg8[%c0_20, %c0_21], %29 {strides = array<i32>} : memref<16x128xf32, #tpu.memory_space<vmem>>, vector<16x128xf32>,
    return
  }
  func.func @transform_0(%arg0: i32) -> (i32, i32) {
    %c0_i32 = arith.constant 0 : i32
    %c0_i32_0 = arith.constant 0 : i32
    return %arg0, %c0_i32 : i32, i32
  }
  func.func @transform_1(%arg0: i32) -> (i32, i32) {
    %c0_i32 = arith.constant 0 : i32
    %c0_i32_0 = arith.constant 0 : i32
    %c0_i32_1 = arith.constant 0 : i32
    return %c0_i32, %c0_i32_0 : i32, i32
  }
  func.func @transform_2(%arg0: i32) -> (i32, i32) {
    %c0_i32 = arith.constant 0 : i32
    %c0_i32_0 = arith.constant 0 : i32
    %c0_i32_1 = arith.constant 0 : i32
    return %c0_i32, %c0_i32_0 : i32, i32
  }
  func.func @transform_3(%arg0: i32) -> (i32, i32) {
    %c0_i32 = arith.constant 0 : i32
    %c0_i32_0 = arith.constant 0 : i32
    %c0_i32_1 = arith.constant 0 : i32
    return %c0_i32, %c0_i32_0 : i32, i32
  }
  func.func @transform_4(%arg0: i32) -> (i32, i32) {
    %c0_i32 = arith.constant 0 : i32
    %c0_i32_0 = arith.constant 0 : i32
    %c0_i32_1 = arith.constant 0 : i32
    return %c0_i32, %c0_i32_0 : i32, i32
  }
  func.func @transform_5(%arg0: i32) -> (i32, i32) {
    %c0_i32 = arith.constant 0 : i32
    %c0_i32_0 = arith.constant 0 : i32
    %c0_i32_1 = arith.constant 0 : i32
    return %c0_i32, %c0_i32_0 : i32, i32
  }
  func.func @transform_6(%arg0: i32) -> (i32, i32) {
    %c0_i32 = arith.constant 0 : i32
    %c0_i32_0 = arith.constant 0 : i32
    %c0_i32_1 = arith.constant 0 : i32
    return %c0_i32, %c0_i32_0 : i32, i32
  }
  func.func @transform_7(%arg0: i32) -> (i32, i32) {
    %c0_i32 = arith.constant 0 : i32
    %c0_i32_0 = arith.constant 0 : i32
    return %arg0, %c0_i32 : i32, i32
  }
}

</mosaic_0001>

<llo_original>
// kernel: mlp_forward_padded.1
$region0: #{mlp_forward_padded.1}
  #allocation0 [shape = 'u32[]', space=smem, size = 0x4, offset = 0x4, fixed_abs, tag = 'smem constant byte address 0x4 - core index']
  #allocation1 [shape = 'u32[144,128]{1,0:T(1,128)}', space=vmem, size = 0x12000, scoped, tag = 'internal scratch']
  %s0 = inlined_call_operand.vmem [shape: f32[16,128], index: 0, kind: input, shape index: {}]
  %s1 = inlined_call_operand.hbm [shape: bf16[128,256], index: 1, kind: input, shape index: {}]
  %s2 = inlined_call_operand.vmem [shape: f32[1,256], index: 2, kind: input, shape index: {}]
  %s3 = inlined_call_operand.hbm [shape: bf16[256,256], index: 3, kind: input, shape index: {}]
  %s4 = inlined_call_operand.vmem [shape: f32[1,256], index: 4, kind: input, shape index: {}]
  %s5 = inlined_call_operand.hbm [shape: bf16[256,128], index: 5, kind: input, shape index: {}]
  %s6 = inlined_call_operand.vmem [shape: f32[1,128], index: 6, kind: input, shape index: {}]
  %s7 = inlined_call_operand.vmem [shape: f32[16,128], index: 7, kind: output, shape index: {}]
  %s8 = sld [smem:[#allocation0]]
  $region50: #{mlp_forward_padded.1} parent=0
    _
  %s10 = ssub.s32 1, %s8
  %s11 = scalar_select 0, %s10, %s8
  $region1: #{mlp_forward_padded.1} parent=0
    #allocation2 [shape = 'u8[65536]{0}', space=vmem, size = 0x10000, scoped, tag = 'input window, operand 1, single buffered']
    #allocation3 [shape = 's32[1]{0}', space=sflag, size = 0x4, scoped, tag = 'scoped memory for mlp_forward_padded.1']
    #allocation4 [shape = 'u8[131072]{0}', space=vmem, size = 0x20000, scoped, tag = 'input window, operand 3, single buffered']
    #allocation5 [shape = 's32[1]{0}', space=sflag, size = 0x4, scoped, tag = 'scoped memory for mlp_forward_padded.1']
    #allocation6 [shape = 'u8[65536]{0}', space=vmem, size = 0x10000, scoped, tag = 'input window, operand 5, single buffered']
    %12 = vsyncpa [#allocation3], 0
    %13 = vsyncpa [#allocation5], 0
    // Predicated region
    $region2: #{mlp_forward_padded.1} parent=1 // pred_check
      _
    $region3: #{mlp_forward_padded.1} parent=1 // pred_check_branch
      %15 = sbr.rel (0) target = $region5
    $region4: #{mlp_forward_padded.1} parent=1 // pred_region
      _
    $region5: #{mlp_forward_padded.1} parent=1 // pred_fallthru
      _
    // Predicated region
    $region6: #{mlp_forward_padded.1} parent=1 // pred_check
      _
    $region7: #{mlp_forward_padded.1} parent=1 // pred_check_branch
      %17 = sbr.rel (0) target = $region9
    $region8: #{mlp_forward_padded.1} parent=1 // pred_region
      %s19 = ssub.s32 2048, 2048
      %20 = vsyncadd [#allocation3], %s19
      %s21 = sshll.u32 [#allocation2], 4
      %s22 = int_to_ptr.vmem [resolvable:$true] %s21
      %27 = dma.hbm_to_vmem [thread:$0]  %s1, 2048, %s22, [#allocation3], 128, 128, 8
    $region9: #{mlp_forward_padded.1} parent=1 // pred_fallthru
      _
    // Predicated region
    $region10: #{mlp_forward_padded.1} parent=1 // pred_check
      _
    $region11: #{mlp_forward_padded.1} parent=1 // pred_check_branch
      %29 = sbr.rel (0) target = $region13
    $region12: #{mlp_forward_padded.1} parent=1 // pred_region
      _
    $region13: #{mlp_forward_padded.1} parent=1 // pred_fallthru
      _
    // Predicated region
    $region14: #{mlp_forward_padded.1} parent=1 // pred_check
      _
    $region15: #{mlp_forward_padded.1} parent=1 // pred_check_branch
      %31 = sbr.rel (0) target = $region17
    $region16: #{mlp_forward_padded.1} parent=1 // pred_region
      %s33 = ssub.s32 4096, 4096
      %34 = vsyncadd [#allocation5], %s33
      %s35 = sshll.u32 [#allocation4], 4
      %s36 = int_to_ptr.vmem [resolvable:$true] %s35
      %41 = dma.hbm_to_vmem [thread:$0]  %s3, 4096, %s36, [#allocation5], 128, 128, 8
    $region17: #{mlp_forward_padded.1} parent=1 // pred_fallthru
      _
    // Predicated region
    $region18: #{mlp_forward_padded.1} parent=1 // pred_check
      _
    $region19: #{mlp_forward_padded.1} parent=1 // pred_check_branch
      %43 = sbr.rel (0) target = $region21
    $region20: #{mlp_forward_padded.1} parent=1 // pred_region
      _
    $region21: #{mlp_forward_padded.1} parent=1 // pred_fallthru
      _
    // Predicated region
    $region22: #{mlp_forward_padded.1} parent=1 // pred_check
      _
    $region23: #{mlp_forward_padded.1} parent=1 // pred_check_branch
      %45 = sbr.rel (0) target = $region25
    $region24: #{mlp_forward_padded.1} parent=1 // pred_region
      %s47 = ssub.s32 2048, 2048
      %48 = vsyncadd [#allocation5], %s47
      %s49 = sshll.u32 [#allocation6], 4
      %s50 = int_to_ptr.vmem [resolvable:$true] %s49
      %55 = dma.hbm_to_vmem [thread:$0]  %s5, 2048, %s50, [#allocation5], 64, 64, 4
    $region25: #{mlp_forward_padded.1} parent=1 // pred_fallthru
      _
    // Predicated region
    $region26: #{mlp_forward_padded.1} parent=1 // pred_check
      _
    $region27: #{mlp_forward_padded.1} parent=1 // pred_check_branch
      %57 = sbr.rel (0) target = $region29
    $region28: #{mlp_forward_padded.1} parent=1 // pred_region
      _
    $region29: #{mlp_forward_padded.1} parent=1 // pred_fallthru
      _
    // Predicated region
    $region30: #{mlp_forward_padded.1} parent=1 // pred_check
      _
    $region31: #{mlp_forward_padded.1} parent=1 // pred_check_branch
      %59 = sbr.rel (0) target = $region33
    $region32: #{mlp_forward_padded.1} parent=1 // pred_region
      %60 = dma.done [#allocation3], 2048
    $region33: #{mlp_forward_padded.1} parent=1 // pred_fallthru
      _
    // Predicated region
    $region34: #{mlp_forward_padded.1} parent=1 // pred_check
      _
    $region35: #{mlp_forward_padded.1} parent=1 // pred_check_branch
      %62 = sbr.rel (0) target = $region37
    $region36: #{mlp_forward_padded.1} parent=1 // pred_region
      %63 = dma.done [#allocation5], 4096
    $region37: #{mlp_forward_padded.1} parent=1 // pred_fallthru
      _
    // Predicated region
    $region38: #{mlp_forward_padded.1} parent=1 // pred_check
      _
    $region39: #{mlp_forward_padded.1} parent=1 // pred_check_branch
      %65 = sbr.rel (0) target = $region41
    $region40: #{mlp_forward_padded.1} parent=1 // pred_region
      %66 = dma.done [#allocation5], 2048
    $region41: #{mlp_forward_padded.1} parent=1 // pred_fallthru
      _
    %v68 = vld [vmem:[%s0] sm:$0xff]
    %v69 = vld [vmem:[%s0 + $0x8] sm:$0xff]
    %v70 = vpack.c.bf16 %v69, %v68
    %v71 = vld [vmem:[#allocation2] sm:$0xff]
    %v72 = vld [vmem:[#allocation2 + $0x8] sm:$0xff]
    %v73 = vld [vmem:[#allocation2 + $0x10] sm:$0xff]
    %v74 = vld [vmem:[#allocation2 + $0x18] sm:$0xff]
    %v75 = vld [vmem:[#allocation2 + $0x20] sm:$0xff]
    %v76 = vld [vmem:[#allocation2 + $0x28] sm:$0xff]
    %v77 = vld [vmem:[#allocation2 + $0x30] sm:$0xff]
    %v78 = vld [vmem:[#allocation2 + $0x38] sm:$0xff]
    %v79 = vld [vmem:[#allocation2 + $0x40] sm:$0xff]
    %v80 = vld [vmem:[#allocation2 + $0x48] sm:$0xff]
    %v81 = vld [vmem:[#allocation2 + $0x50] sm:$0xff]
    %v82 = vld [vmem:[#allocation2 + $0x58] sm:$0xff]
    %v83 = vld [vmem:[#allocation2 + $0x60] sm:$0xff]
    %v84 = vld [vmem:[#allocation2 + $0x68] sm:$0xff]
    %v85 = vld [vmem:[#allocation2 + $0x70] sm:$0xff]
    %v86 = vld [vmem:[#allocation2 + $0x78] sm:$0xff]
    %v87 = vld [vmem:[%s2] sm:$0x3]
    %v89 = vlaneseq
    %v90 = vshrl.u32 %v89, 7
    %v91 = vsub.s32 0, %v90
    %v92 = vrot.slane %v87, %v91
    %v93 = vlaneseq
    %v94 = vshrl.u32 %v93, 7
    %v95 = vsub.s32 1, %v94
    %v96 = vrot.slane %v87, %v95
    %v115 = vunpack.c.l.b16 %v71
    %v116 = vunpack.c.h.b16 %v71
    %v117 = vunpack.c.l.b16 %v72
    %v118 = vunpack.c.h.b16 %v72
    %v119 = vunpack.c.l.b16 %v73
    %v120 = vunpack.c.h.b16 %v73
    %v121 = vunpack.c.l.b16 %v74
    %v122 = vunpack.c.h.b16 %v74
    %v123 = vunpack.c.l.b16 %v75
    %v124 = vunpack.c.h.b16 %v75
    %v125 = vunpack.c.l.b16 %v76
    %v126 = vunpack.c.h.b16 %v76
    %v127 = vunpack.c.l.b16 %v77
    %v128 = vunpack.c.h.b16 %v77
    %v129 = vunpack.c.l.b16 %v78
    %v130 = vunpack.c.h.b16 %v78
    %v131 = vunpack.c.l.b16 %v79
    %v132 = vunpack.c.h.b16 %v79
    %v133 = vunpack.c.l.b16 %v80
    %v134 = vunpack.c.h.b16 %v80
    %v135 = vunpack.c.l.b16 %v81
    %v136 = vunpack.c.h.b16 %v81
    %v137 = vunpack.c.l.b16 %v82
    %v138 = vunpack.c.h.b16 %v82
    %v139 = vunpack.c.l.b16 %v83
    %v140 = vunpack.c.h.b16 %v83
    %v141 = vunpack.c.l.b16 %v84
    %v142 = vunpack.c.h.b16 %v84
    %v143 = vunpack.c.l.b16 %v85
    %v144 = vunpack.c.h.b16 %v85
    %v145 = vunpack.c.l.b16 %v86
    %v146 = vunpack.c.h.b16 %v86
    %v147 = vpack.c.b16 %v117, %v115
    %v148 = vpack.c.b16 %v118, %v116
    %v149 = vpack.c.b16 %v121, %v119
    %v150 = vpack.c.b16 %v122, %v120
    %v151 = vpack.c.b16 %v125, %v123
    %v152 = vpack.c.b16 %v126, %v124
    %v153 = vpack.c.b16 %v129, %v127
    %v154 = vpack.c.b16 %v130, %v128
    %v155 = vpack.c.b16 %v133, %v131
    %v156 = vpack.c.b16 %v134, %v132
    %v157 = vpack.c.b16 %v137, %v135
    %v158 = vpack.c.b16 %v138, %v136
    %v159 = vpack.c.b16 %v141, %v139
    %v160 = vpack.c.b16 %v142, %v140
    %v161 = vpack.c.b16 %v145, %v143
    %v162 = vpack.c.b16 %v146, %v144
    %179 = vmatprep.subr.bf16.mxu0 %v162
    %180 = vmatpush1.bf16.msra.mxu0 %v161
    %181 = vmatprep.subr.bf16.mxu0 %v160
    %182 = vmatpush1.bf16.msra.mxu0 %v159
    %183 = vmatprep.subr.bf16.mxu0 %v158
    %184 = vmatpush1.bf16.msra.mxu0 %v157
    %185 = vmatprep.subr.bf16.mxu0 %v156
    %186 = vmatpush1.bf16.msra.mxu0 %v155
    %187 = vmatprep.subr.bf16.mxu0 %v154
    %188 = vmatpush1.bf16.msra.mxu0 %v153
    %189 = vmatprep.subr.bf16.mxu0 %v152
    %190 = vmatpush1.bf16.msra.mxu0 %v151
    %191 = vmatprep.subr.bf16.mxu0 %v150
    %192 = vmatpush1.bf16.msra.mxu0 %v149
    %193 = vmatprep.subr.bf16.mxu0 %v148
    %194 = vmatpush1.bf16.msra.mxu0 %v147
    %195 = vmatprep.subr.bf16.mxu0 0
    %196 = vmatpush2.bf16.msra.mxu0 0
    %197 = vmatprep.subr.bf16.mxu0 0
    %198 = vmatpush2.bf16.msra.mxu0 0
    %199 = vmatprep.subr.bf16.mxu0 0
    %200 = vmatpush2.bf16.msra.mxu0 0
    %201 = vmatprep.subr.bf16.mxu0 0
    %202 = vmatpush2.bf16.msra.mxu0 0
    %203 = vmatprep.subr.bf16.mxu0 0
    %204 = vmatpush2.bf16.msra.mxu0 0
    %205 = vmatprep.subr.bf16.mxu0 0
    %206 = vmatpush2.bf16.msra.mxu0 0
    %207 = vmatprep.subr.bf16.mxu0 0
    %208 = vmatpush2.bf16.msra.mxu0 0
    %209 = vmatprep.subr.bf16.mxu0 0
    %210 = vmatpush2.bf16.msra.mxu0 0
    %211 = vmatprep.mubr.bf16.mxu0 0
    %212 = vmatmul.mubr.bf16.gmra.mxu0 %v70
    %v213 = vpop.f32.mrf.mxu0
    %v214 = vadd.f32 %v92, %v213
    %v215 = vpop.f32.mrf.mxu0
    %v216 = vadd.f32 %v96, %v215
    %v217 = vpop.f32.mrf.mxu0
    %v218 = vadd.f32 %v92, %v217
    %v219 = vpop.f32.mrf.mxu0
    %v220 = vadd.f32 %v96, %v219
    %221 = vdwg.mxu0
    %v222 = vmax.f32 %v214, 0.0
    %v223 = vmax.f32 %v216, 0.0
    %v224 = vmax.f32 %v218, 0.0
    %v225 = vmax.f32 %v220, 0.0
    %v226 = vpack.c.bf16 %v224, %v222
    %v227 = vpack.c.bf16 %v225, %v223
    %v228 = vld [vmem:[#allocation4] sm:$0xff]
    %v229 = vld [vmem:[#allocation4 + $0x8] sm:$0xff]
    %v230 = vld [vmem:[#allocation4 + $0x10] sm:$0xff]
    %v231 = vld [vmem:[#allocation4 + $0x18] sm:$0xff]
    %v232 = vld [vmem:[#allocation4 + $0x20] sm:$0xff]
    %v233 = vld [vmem:[#allocation4 + $0x28] sm:$0xff]
    %v234 = vld [vmem:[#allocation4 + $0x30] sm:$0xff]
    %v235 = vld [vmem:[#allocation4 + $0x38] sm:$0xff]
    %v236 = vld [vmem:[#allocation4 + $0x40] sm:$0xff]
    %v237 = vld [vmem:[#allocation4 + $0x48] sm:$0xff]
    %v238 = vld [vmem:[#allocation4 + $0x50] sm:$0xff]
    %v239 = vld [vmem:[#allocation4 + $0x58] sm:$0xff]
    %v240 = vld [vmem:[#allocation4 + $0x60] sm:$0xff]
    %v241 = vld [vmem:[#allocation4 + $0x68] sm:$0xff]
    %v242 = vld [vmem:[#allocation4 + $0x70] sm:$0xff]
    %v243 = vld [vmem:[#allocation4 + $0x78] sm:$0xff]
    %v244 = vld [vmem:[#allocation4 + $0x80] sm:$0xff]
    %v245 = vld [vmem:[#allocation4 + $0x88] sm:$0xff]
    %v246 = vld [vmem:[#allocation4 + $0x90] sm:$0xff]
    %v247 = vld [vmem:[#allocation4 + $0x98] sm:$0xff]
    %v248 = vld [vmem:[#allocation4 + $0xa0] sm:$0xff]
    %v249 = vld [vmem:[#allocation4 + $0xa8] sm:$0xff]
    %v250 = vld [vmem:[#allocation4 + $0xb0] sm:$0xff]
    %v251 = vld [vmem:[#allocation4 + $0xb8] sm:$0xff]
    %v252 = vld [vmem:[#allocation4 + $0xc0] sm:$0xff]
    %v253 = vld [vmem:[#allocation4 + $0xc8] sm:$0xff]
    %v254 = vld [vmem:[#allocation4 + $0xd0] sm:$0xff]
    %v255 = vld [vmem:[#allocation4 + $0xd8] sm:$0xff]
    %v256 = vld [vmem:[#allocation4 + $0xe0] sm:$0xff]
    %v257 = vld [vmem:[#allocation4 + $0xe8] sm:$0xff]
    %v258 = vld [vmem:[#allocation4 + $0xf0] sm:$0xff]
    %v259 = vld [vmem:[#allocation4 + $0xf8] sm:$0xff]
    %v260 = vld [vmem:[%s4] sm:$0x3]
    %v262 = vlaneseq
    %v263 = vshrl.u32 %v262, 7
    %v264 = vsub.s32 0, %v263
    %v265 = vrot.slane %v260, %v264
    %v266 = vlaneseq
    %v267 = vshrl.u32 %v266, 7
    %v268 = vsub.s32 1, %v267
    %v269 = vrot.slane %v260, %v268
    %v304 = vunpack.c.l.b16 %v228
    %v305 = vunpack.c.h.b16 %v228
    %v306 = vunpack.c.l.b16 %v229
    %v307 = vunpack.c.h.b16 %v229
    %v308 = vunpack.c.l.b16 %v230
    %v309 = vunpack.c.h.b16 %v230
    %v310 = vunpack.c.l.b16 %v231
    %v311 = vunpack.c.h.b16 %v231
    %v312 = vunpack.c.l.b16 %v232
    %v313 = vunpack.c.h.b16 %v232
    %v314 = vunpack.c.l.b16 %v233
    %v315 = vunpack.c.h.b16 %v233
    %v316 = vunpack.c.l.b16 %v234
    %v317 = vunpack.c.h.b16 %v234
    %v318 = vunpack.c.l.b16 %v235
    %v319 = vunpack.c.h.b16 %v235
    %v320 = vunpack.c.l.b16 %v236
    %v321 = vunpack.c.h.b16 %v236
    %v322 = vunpack.c.l.b16 %v237
    %v323 = vunpack.c.h.b16 %v237
    %v324 = vunpack.c.l.b16 %v238
    %v325 = vunpack.c.h.b16 %v238
    %v326 = vunpack.c.l.b16 %v239
    %v327 = vunpack.c.h.b16 %v239
    %v328 = vunpack.c.l.b16 %v240
    %v329 = vunpack.c.h.b16 %v240
    %v330 = vunpack.c.l.b16 %v241
    %v331 = vunpack.c.h.b16 %v241
    %v332 = vunpack.c.l.b16 %v242
    %v333 = vunpack.c.h.b16 %v242
    %v334 = vunpack.c.l.b16 %v243
    %v335 = vunpack.c.h.b16 %v243
    %v336 = vunpack.c.l.b16 %v244
    %v337 = vunpack.c.h.b16 %v244
    %v338 = vunpack.c.l.b16 %v245
    %v339 = vunpack.c.h.b16 %v245
    %v340 = vunpack.c.l.b16 %v246
    %v341 = vunpack.c.h.b16 %v246
    %v342 = vunpack.c.l.b16 %v247
    %v343 = vunpack.c.h.b16 %v247
    %v344 = vunpack.c.l.b16 %v248
    %v345 = vunpack.c.h.b16 %v248
    %v346 = vunpack.c.l.b16 %v249
    %v347 = vunpack.c.h.b16 %v249
    %v348 = vunpack.c.l.b16 %v250
    %v349 = vunpack.c.h.b16 %v250
    %v350 = vunpack.c.l.b16 %v251
    %v351 = vunpack.c.h.b16 %v251
    %v352 = vunpack.c.l.b16 %v252
    %v353 = vunpack.c.h.b16 %v252
    %v354 = vunpack.c.l.b16 %v253
    %v355 = vunpack.c.h.b16 %v253
    %v356 = vunpack.c.l.b16 %v254
    %v357 = vunpack.c.h.b16 %v254
    %v358 = vunpack.c.l.b16 %v255
    %v359 = vunpack.c.h.b16 %v255
    %v360 = vunpack.c.l.b16 %v256
    %v361 = vunpack.c.h.b16 %v256
    %v362 = vunpack.c.l.b16 %v257
    %v363 = vunpack.c.h.b16 %v257
    %v364 = vunpack.c.l.b16 %v258
    %v365 = vunpack.c.h.b16 %v258
    %v366 = vunpack.c.l.b16 %v259
    %v367 = vunpack.c.h.b16 %v259
    %v368 = vpack.c.b16 %v306, %v304
    %v369 = vpack.c.b16 %v307, %v305
    %v370 = vpack.c.b16 %v310, %v308
    %v371 = vpack.c.b16 %v311, %v309
    %v372 = vpack.c.b16 %v314, %v312
    %v373 = vpack.c.b16 %v315, %v313
    %v374 = vpack.c.b16 %v318, %v316
    %v375 = vpack.c.b16 %v319, %v317
    %v376 = vpack.c.b16 %v322, %v320
    %v377 = vpack.c.b16 %v323, %v321
    %v378 = vpack.c.b16 %v326, %v324
    %v379 = vpack.c.b16 %v327, %v325
    %v380 = vpack.c.b16 %v330, %v328
    %v381 = vpack.c.b16 %v331, %v329
    %v382 = vpack.c.b16 %v334, %v332
    %v383 = vpack.c.b16 %v335, %v333
    %v384 = vpack.c.b16 %v338, %v336
    %v385 = vpack.c.b16 %v339, %v337
    %v386 = vpack.c.b16 %v342, %v340
    %v387 = vpack.c.b16 %v343, %v341
    %v388 = vpack.c.b16 %v346, %v344
    %v389 = vpack.c.b16 %v347, %v345
    %v390 = vpack.c.b16 %v350, %v348
    %v391 = vpack.c.b16 %v351, %v349
    %v392 = vpack.c.b16 %v354, %v352
    %v393 = vpack.c.b16 %v355, %v353
    %v394 = vpack.c.b16 %v358, %v356
    %v395 = vpack.c.b16 %v359, %v357
    %v396 = vpack.c.b16 %v362, %v360
    %v397 = vpack.c.b16 %v363, %v361
    %v398 = vpack.c.b16 %v366, %v364
    %v399 = vpack.c.b16 %v367, %v365
    %432 = vmatprep.subr.bf16.mxu0 %v383
    %433 = vmatpush1.bf16.msra.mxu0 %v382
    %434 = vmatprep.subr.bf16.mxu0 %v381
    %435 = vmatpush1.bf16.msra.mxu0 %v380
    %436 = vmatprep.subr.bf16.mxu0 %v379
    %437 = vmatpush1.bf16.msra.mxu0 %v378
    %438 = vmatprep.subr.bf16.mxu0 %v377
    %439 = vmatpush1.bf16.msra.mxu0 %v376
    %440 = vmatprep.subr.bf16.mxu0 %v375
    %441 = vmatpush1.bf16.msra.mxu0 %v374
    %442 = vmatprep.subr.bf16.mxu0 %v373
    %443 = vmatpush1.bf16.msra.mxu0 %v372
    %444 = vmatprep.subr.bf16.mxu0 %v371
    %445 = vmatpush1.bf16.msra.mxu0 %v370
    %446 = vmatprep.subr.bf16.mxu0 %v369
    %447 = vmatpush1.bf16.msra.mxu0 %v368
    %448 = vmatprep.subr.bf16.mxu0 %v399
    %449 = vmatpush2.bf16.msra.mxu0 %v398
    %450 = vmatprep.subr.bf16.mxu0 %v397
    %451 = vmatpush2.bf16.msra.mxu0 %v396
    %452 = vmatprep.subr.bf16.mxu0 %v395
    %453 = vmatpush2.bf16.msra.mxu0 %v394
    %454 = vmatprep.subr.bf16.mxu0 %v393
    %455 = vmatpush2.bf16.msra.mxu0 %v392
    %456 = vmatprep.subr.bf16.mxu0 %v391
    %457 = vmatpush2.bf16.msra.mxu0 %v390
    %458 = vmatprep.subr.bf16.mxu0 %v389
    %459 = vmatpush2.bf16.msra.mxu0 %v388
    %460 = vmatprep.subr.bf16.mxu0 %v387
    %461 = vmatpush2.bf16.msra.mxu0 %v386
    %462 = vmatprep.subr.bf16.mxu0 %v385
    %463 = vmatpush2.bf16.msra.mxu0 %v384
    %464 = vmatprep.mubr.bf16.mxu0 %v227
    %465 = vmatmul.mubr.bf16.gmra.mxu0 %v226
    %v466 = vpop.f32.mrf.mxu0
    %v467 = vadd.f32 %v265, %v466
    %v468 = vpop.f32.mrf.mxu0
    %v469 = vadd.f32 %v269, %v468
    %v470 = vpop.f32.mrf.mxu0
    %v471 = vadd.f32 %v265, %v470
    %v472 = vpop.f32.mrf.mxu0
    %v473 = vadd.f32 %v269, %v472
    %474 = vdwg.mxu0
    %v475 = vmax.f32 %v467, 0.0
    %v476 = vmax.f32 %v469, 0.0
    %v477 = vmax.f32 %v471, 0.0
    %v478 = vmax.f32 %v473, 0.0
    %v479 = vpack.c.bf16 %v477, %v475
    %v480 = vpack.c.bf16 %v478, %v476
    %v481 = vld [vmem:[#allocation6] sm:$0xf]
    %v482 = vld [vmem:[#allocation6 + $0x4] sm:$0xf]
    %v483 = vld [vmem:[#allocation6 + $0x8] sm:$0xf]
    %v484 = vld [vmem:[#allocation6 + $0xc] sm:$0xf]
    %v485 = vld [vmem:[#allocation6 + $0x10] sm:$0xf]
    %v486 = vld [vmem:[#allocation6 + $0x14] sm:$0xf]
    %v487 = vld [vmem:[#allocation6 + $0x18] sm:$0xf]
    %v488 = vld [vmem:[#allocation6 + $0x1c] sm:$0xf]
    %v489 = vld [vmem:[#allocation6 + $0x20] sm:$0xf]
    %v490 = vld [vmem:[#allocation6 + $0x24] sm:$0xf]
    %v491 = vld [vmem:[#allocation6 + $0x28] sm:$0xf]
    %v492 = vld [vmem:[#allocation6 + $0x2c] sm:$0xf]
    %v493 = vld [vmem:[#allocation6 + $0x30] sm:$0xf]
    %v494 = vld [vmem:[#allocation6 + $0x34] sm:$0xf]
    %v495 = vld [vmem:[#allocation6 + $0x38] sm:$0xf]
    %v496 = vld [vmem:[#allocation6 + $0x3c] sm:$0xf]
    %v497 = vld [vmem:[#allocation6 + $0x40] sm:$0xf]
    %v498 = vld [vmem:[#allocation6 + $0x44] sm:$0xf]
    %v499 = vld [vmem:[#allocation6 + $0x48] sm:$0xf]
    %v500 = vld [vmem:[#allocation6 + $0x4c] sm:$0xf]
    %v501 = vld [vmem:[#allocation6 + $0x50] sm:$0xf]
    %v502 = vld [vmem:[#allocation6 + $0x54] sm:$0xf]
    %v503 = vld [vmem:[#allocation6 + $0x58] sm:$0xf]
    %v504 = vld [vmem:[#allocation6 + $0x5c] sm:$0xf]
    %v505 = vld [vmem:[#allocation6 + $0x60] sm:$0xf]
    %v506 = vld [vmem:[#allocation6 + $0x64] sm:$0xf]
    %v507 = vld [vmem:[#allocation6 + $0x68] sm:$0xf]
    %v508 = vld [vmem:[#allocation6 + $0x6c] sm:$0xf]
    %v509 = vld [vmem:[#allocation6 + $0x70] sm:$0xf]
    %v510 = vld [vmem:[#allocation6 + $0x74] sm:$0xf]
    %v511 = vld [vmem:[#allocation6 + $0x78] sm:$0xf]
    %v512 = vld [vmem:[#allocation6 + $0x7c] sm:$0xf]
    %v513 = vld [vmem:[%s6] sm:$0x1]
    %v515 = vlaneseq
    %v516 = vshrl.u32 %v515, 7
    %v517 = vsub.s32 0, %v516
    %v518 = vrot.slane %v513, %v517
    %v552 = vunpack.c.l.b16 %v481
    %v553 = vunpack.c.l.b16 %v482
    %v554 = vunpack.c.l.b16 %v483
    %v555 = vunpack.c.l.b16 %v484
    %v556 = vunpack.c.l.b16 %v485
    %v557 = vunpack.c.l.b16 %v486
    %v558 = vunpack.c.l.b16 %v487
    %v559 = vunpack.c.l.b16 %v488
    %v560 = vunpack.c.l.b16 %v489
    %v561 = vunpack.c.l.b16 %v490
    %v562 = vunpack.c.l.b16 %v491
    %v563 = vunpack.c.l.b16 %v492
    %v564 = vunpack.c.l.b16 %v493
    %v565 = vunpack.c.l.b16 %v494
    %v566 = vunpack.c.l.b16 %v495
    %v567 = vunpack.c.l.b16 %v496
    %v568 = vunpack.c.l.b16 %v497
    %v569 = vunpack.c.l.b16 %v498
    %v570 = vunpack.c.l.b16 %v499
    %v571 = vunpack.c.l.b16 %v500
    %v572 = vunpack.c.l.b16 %v501
    %v573 = vunpack.c.l.b16 %v502
    %v574 = vunpack.c.l.b16 %v503
    %v575 = vunpack.c.l.b16 %v504
    %v576 = vunpack.c.l.b16 %v505
    %v577 = vunpack.c.l.b16 %v506
    %v578 = vunpack.c.l.b16 %v507
    %v579 = vunpack.c.l.b16 %v508
    %v580 = vunpack.c.l.b16 %v509
    %v581 = vunpack.c.l.b16 %v510
    %v582 = vunpack.c.l.b16 %v511
    %v583 = vunpack.c.l.b16 %v512
    %v584 = vpack.c.b16 %v553, %v552
    %v585 = vpack.c.b16 %v555, %v554
    %v586 = vpack.c.b16 %v557, %v556
    %v587 = vpack.c.b16 %v559, %v558
    %v588 = vpack.c.b16 %v561, %v560
    %v589 = vpack.c.b16 %v563, %v562
    %v590 = vpack.c.b16 %v565, %v564
    %v591 = vpack.c.b16 %v567, %v566
    %v592 = vpack.c.b16 %v569, %v568
    %v593 = vpack.c.b16 %v571, %v570
    %v594 = vpack.c.b16 %v573, %v572
    %v595 = vpack.c.b16 %v575, %v574
    %v596 = vpack.c.b16 %v577, %v576
    %v597 = vpack.c.b16 %v579, %v578
    %v598 = vpack.c.b16 %v581, %v580
    %v599 = vpack.c.b16 %v583, %v582
    %616 = vmatprep.subr.bf16.mxu0 0
    %617 = vmatpush1.bf16.msra.mxu0 %v591
    %618 = vmatprep.subr.bf16.mxu0 0
    %619 = vmatpush1.bf16.msra.mxu0 %v590
    %620 = vmatprep.subr.bf16.mxu0 0
    %621 = vmatpush1.bf16.msra.mxu0 %v589
    %622 = vmatprep.subr.bf16.mxu0 0
    %623 = vmatpush1.bf16.msra.mxu0 %v588
    %624 = vmatprep.subr.bf16.mxu0 0
    %625 = vmatpush1.bf16.msra.mxu0 %v587
    %626 = vmatprep.subr.bf16.mxu0 0
    %627 = vmatpush1.bf16.msra.mxu0 %v586
    %628 = vmatprep.subr.bf16.mxu0 0
    %629 = vmatpush1.bf16.msra.mxu0 %v585
    %630 = vmatprep.subr.bf16.mxu0 0
    %631 = vmatpush1.bf16.msra.mxu0 %v584
    %632 = vmatprep.subr.bf16.mxu0 0
    %633 = vmatpush2.bf16.msra.mxu0 %v599
    %634 = vmatprep.subr.bf16.mxu0 0
    %635 = vmatpush2.bf16.msra.mxu0 %v598
    %636 = vmatprep.subr.bf16.mxu0 0
    %637 = vmatpush2.bf16.msra.mxu0 %v597
    %638 = vmatprep.subr.bf16.mxu0 0
    %639 = vmatpush2.bf16.msra.mxu0 %v596
    %640 = vmatprep.subr.bf16.mxu0 0
    %641 = vmatpush2.bf16.msra.mxu0 %v595
    %642 = vmatprep.subr.bf16.mxu0 0
    %643 = vmatpush2.bf16.msra.mxu0 %v594
    %644 = vmatprep.subr.bf16.mxu0 0
    %645 = vmatpush2.bf16.msra.mxu0 %v593
    %646 = vmatprep.subr.bf16.mxu0 0
    %647 = vmatpush2.bf16.msra.mxu0 %v592
    %648 = vmatprep.mubr.bf16.mxu0 %v480
    %649 = vmatmul.mubr.bf16.gmra.mxu0 %v479
    %v650 = vpop.f32.mrf.mxu0
    %v651 = vadd.f32 %v518, %v650
    %v652 = vpop.f32.mrf.mxu0
    %v653 = vpop.f32.mrf.mxu0
    %v654 = vadd.f32 %v518, %v653
    %v655 = vpop.f32.mrf.mxu0
    %656 = vdwg.mxu0
    %v657 = vmul.f32 %v651, 0.5
    %v658 = vmul.f32 %v654, 0.5
    %v659 = vtanh.pop %v657
    %v660 = vtanh.pop %v658
    %v661 = vadd.f32 %v659, 1.0
    %v662 = vadd.f32 %v660, 1.0
    %v663 = vmul.f32 %v661, 0.5
    %v664 = vmul.f32 %v662, 0.5
    %665 = vst [vmem:[%s7] sm:$0xff] %v663
    %666 = vst [vmem:[%s7 + $0x8] sm:$0xff] %v664
    // Predicated region
    $region42: #{mlp_forward_padded.1} parent=1 // pred_check
      _
    $region43: #{mlp_forward_padded.1} parent=1 // pred_check_branch
      %668 = sbr.rel (0) target = $region45
    $region44: #{mlp_forward_padded.1} parent=1 // pred_region
      _
    $region45: #{mlp_forward_padded.1} parent=1 // pred_fallthru
      _
    // Predicated region
    $region46: #{mlp_forward_padded.1} parent=1 // pred_check
      _
    $region47: #{mlp_forward_padded.1} parent=1 // pred_check_branch
      %670 = sbr.rel (0) target = $region49
    $region48: #{mlp_forward_padded.1} parent=1 // pred_region
      _
    $region49: #{mlp_forward_padded.1} parent=1 // pred_fallthru
      _
    %671 = vsyncpa [#allocation3], 1
    %672 = vsyncpa [#allocation5], 1

</llo_original>
